<compile_context>
chip_gen: v7x
topology: tpu7x:2x2x1
jax: 0.10.0
libtpu: 0.0.40
codegen_flags: <defaults>
</compile_context>

<pallas_src>
import functools

import jax
import jax.numpy as jnp
from jax.experimental import pallas as pl
from jax.experimental.pallas import tpu as pltpu


# ---------------------------------------------------------------------------
# LSTM kernel: single invocation; whole sequence resident in VMEM.
# Inputs:
#   x_ref   : (T*B, I)  time-major, batch-contiguous rows
#   wih_ref : (I, 4H)   W_ih^T
#   whh_ref : (H, 4H)   W_hh^T
#   b_ref   : (1, 4H)   b_ih + b_hh (hoisted, added once in the batched proj)
# Output:
#   out_ref : (T, B, H) per-step hidden states
# Scratch:
#   gx_ref  : (T*B, 4H) precomputed input projection
# ---------------------------------------------------------------------------
def _lstm_kernel(x_ref, wih_ref, whh_ref, b_ref, out_ref, gx_ref):
    T, B, H = out_ref.shape

    # Phase 1: batched input projection for every timestep in ONE MXU matmul,
    # bias folded in once (instead of per-step broadcast adds).
    gx_ref[...] = (
        jnp.dot(x_ref[...], wih_ref[...], preferred_element_type=jnp.float32)
        + b_ref[...]
    )

    # Phase 2: the inherently sequential recurrence.  Per step only the small
    # recurrent matmul h @ W_hh^T remains on the critical path.
    def step(t, carry):
        h, c = carry
        row = pl.multiple_of(t * B, B)
        gates = gx_ref[pl.ds(row, B), :] + jnp.dot(
            h, whh_ref[...], preferred_element_type=jnp.float32)
        # Gate order follows torch.nn.LSTM: i, f, g, o.  Kept in f32.
        i_g = jax.nn.sigmoid(gates[:, 0 * H:1 * H])
        f_g = jax.nn.sigmoid(gates[:, 1 * H:2 * H])
        g_g = jnp.tanh(gates[:, 2 * H:3 * H])
        o_g = jax.nn.sigmoid(gates[:, 3 * H:4 * H])
        c_new = f_g * c + i_g * g_g
        h_new = o_g * jnp.tanh(c_new)
        out_ref[t] = h_new          # dynamic store along leading dim, full (B,H) slab
        return h_new, c_new

    h0 = jnp.zeros((B, H), jnp.float32)
    c0 = jnp.zeros((B, H), jnp.float32)
    jax.lax.fori_loop(0, T, step, (h0, c0))


def lstm_pallas(x_2d, w_ih_t, w_hh_t, bias, *, seq_len, batch):
    """x_2d: (T*B, I); w_ih_t: (I,4H); w_hh_t: (H,4H); bias: (1,4H) -> (T,B,H)."""
    TB, I = x_2d.shape
    H = w_hh_t.shape[0]
    T, B = seq_len, batch
    assert TB == T * B
    return pl.pallas_call(
        _lstm_kernel,
        out_shape=jax.ShapeDtypeStruct((T, B, H), jnp.float32),
        grid_spec=pltpu.PrefetchScalarGridSpec(
            num_scalar_prefetch=0,
            grid=(1,),
            in_specs=[
                pl.BlockSpec((TB, I), lambda i: (0, 0)),
                pl.BlockSpec((I, 4 * H), lambda i: (0, 0)),
                pl.BlockSpec((H, 4 * H), lambda i: (0, 0)),
                pl.BlockSpec((1, 4 * H), lambda i: (0, 0)),
            ],
            out_specs=pl.BlockSpec((T, B, H), lambda i: (0, 0, 0)),
            scratch_shapes=[pltpu.VMEM((TB, 4 * H), jnp.float32)],
        ),
        compiler_params=pltpu.CompilerParams(
            dimension_semantics=("arbitrary",),
            # x + gx scratch + W_hh + output at real shapes (T=529, H=256, B=2)
            # total ~9-16 MiB with double buffering; raise v5e's scoped default.
            vmem_limit_bytes=32 * 1024 * 1024,
        ),
    )(x_2d, w_ih_t, w_hh_t, bias)


# ---------------------------------------------------------------------------
# FC head: y = ReLU(x @ W^T + b), K-tiled reduction with f32 accumulator.
# Weight streamed from HBM in bf16 tiles (f32 accumulation).
# Grid = (output-column tiles [parallel], K tiles [arbitrary, reduction last]).
# ---------------------------------------------------------------------------
def _fc_kernel(x_ref, w_ref, b_ref, o_ref, acc_ref):
    k = pl.program_id(1)

    @pl.when(k == 0)
    def _():
        acc_ref[...] = jnp.zeros_like(acc_ref)

    acc_ref[...] += jnp.dot(
        x_ref[...], w_ref[...].astype(jnp.float32),
        preferred_element_type=jnp.float32)

    @pl.when(k == pl.num_programs(1) - 1)
    def _():
        # TODO(synk): nn.Dropout(p=0.3) is identity in eval mode; training-mode
        # dropout (random mask + 1/(1-p) scaling) is not implemented here.
        o_ref[...] = jnp.maximum(acc_ref[...] + b_ref[...], 0.0)


def _largest_divisor(n, upper):
    """Largest divisor of n that is <= upper, preferring lane multiples of 128."""
    upper = min(n, upper)
    for cand in range(upper, 0, -1):
        if n % cand == 0 and cand % 128 == 0:
            return cand
    for cand in range(upper, 0, -1):
        if n % cand == 0:
            return cand
    return n


def fc_pallas(x_flat, w_t, bias, *, block_k_max=8192, block_out=None):
    """x_flat: (B, F) f32; w_t: (F, O) (bf16 or f32); bias: (1, O) f32 -> (B, O)."""
    B, F = x_flat.shape
    O = w_t.shape[1]
    if block_out is None:
        # 128-wide output tiles give v7x a "parallel" axis to shard the
        # mem-bound FC across its 2 TensorCores; harmless on v5e/v6e.
        block_out = 128 if (O % 128 == 0 and O > 128) else O
    # K tile capped at 8192 so a double-buffered weight tile stays well inside
    # v7x's 64 MiB VMEM / 32 MiB scoped default (real shapes -> block_k=5888).
    block_k = _largest_divisor(F, block_k_max)
    num_o = O // block_out
    num_k = F // block_k
    return pl.pallas_call(
        _fc_kernel,
        out_shape=jax.ShapeDtypeStruct((B, O), jnp.float32),
        grid_spec=pltpu.PrefetchScalarGridSpec(
            num_scalar_prefetch=0,
            grid=(num_o, num_k),
            in_specs=[
                pl.BlockSpec((B, block_k), lambda o, k: (0, k)),
                pl.BlockSpec((block_k, block_out), lambda o, k: (k, o)),
                pl.BlockSpec((1, block_out), lambda o, k: (0, o)),
            ],
            out_specs=pl.BlockSpec((B, block_out), lambda o, k: (0, o)),
            scratch_shapes=[pltpu.VMEM((B, block_out), jnp.float32)],
        ),
        compiler_params=pltpu.CompilerParams(
            dimension_semantics=("parallel", "arbitrary")),
    )(x_flat, w_t, bias)


# ---------------------------------------------------------------------------
# Module wrapper
# ---------------------------------------------------------------------------
def init_params(key, input_len, hidden_size, seq_len, fc_out):
    ks = jax.random.split(key, 6)
    h_bound = 1.0 / jnp.sqrt(hidden_size)
    w_ih = jax.random.uniform(ks[0], (4 * hidden_size, input_len),
                              minval=-h_bound, maxval=h_bound, dtype=jnp.float32)
    w_hh = jax.random.uniform(ks[1], (4 * hidden_size, hidden_size),
                              minval=-h_bound, maxval=h_bound, dtype=jnp.float32)
    b_ih = jax.random.uniform(ks[2], (4 * hidden_size,),
                              minval=-h_bound, maxval=h_bound, dtype=jnp.float32)
    b_hh = jax.random.uniform(ks[3], (4 * hidden_size,),
                              minval=-h_bound, maxval=h_bound, dtype=jnp.float32)
    fc_in = seq_len * hidden_size
    f_bound = 1.0 / jnp.sqrt(fc_in)
    w_fc = jax.random.uniform(ks[4], (fc_out, fc_in),
                              minval=-f_bound, maxval=f_bound, dtype=jnp.float32)
    b_fc = jax.random.uniform(ks[5], (fc_out,),
                              minval=-f_bound, maxval=f_bound, dtype=jnp.float32)
    return dict(w_ih=w_ih, w_hh=w_hh, b_ih=b_ih, b_hh=b_hh, w_fc=w_fc, b_fc=b_fc)


@functools.partial(jax.jit, static_argnames=("fc_weight_dtype",))
def lstmmodule_forward(x, params, *, fc_weight_dtype=jnp.bfloat16):
    """x: (B, T, I) float32 -> (B, fc_out) float32.

    fc_weight_dtype=jnp.bfloat16 halves the HBM traffic of the memory-bound FC
    weight stream (f32 accumulation); pass jnp.float32 for bit-exact f32.
    """
    B, T, I = x.shape
    # Time-major, batch-contiguous rows so per-step gate rows are contiguous.
    x_2d = jnp.transpose(x, (1, 0, 2)).reshape(T * B, I)          # (T*B, I)
    w_ih_t = params["w_ih"].T                                      # (I, 4H)
    w_hh_t = params["w_hh"].T                                      # (H, 4H)
    bias = (params["b_ih"] + params["b_hh"]).reshape(1, -1)        # (1, 4H)
    out_tbh = lstm_pallas(x_2d, w_ih_t, w_hh_t, bias, seq_len=T, batch=B)
    H = out_tbh.shape[-1]
    # Small (~1 MiB at real shapes) layout fix done by XLA; negligible vs. the
    # FC weight stream.
    flat = jnp.transpose(out_tbh, (1, 0, 2)).reshape(B, T * H)     # (B, T*H)
    w_fc_t = params["w_fc"].T.astype(fc_weight_dtype)              # (T*H, O)
    return fc_pallas(flat, w_fc_t, params["b_fc"].reshape(1, -1))


# ---------------------------------------------------------------------------
# Pure-JAX reference for verification (same bf16 rounding of the FC weight)
# ---------------------------------------------------------------------------
def reference_forward(x, params, fc_weight_dtype=jnp.bfloat16):
    B, T, I = x.shape
    H = params["w_hh"].shape[1]

    def step(carry, xt):
        h, c = carry
        gates = (xt @ params["w_ih"].T + params["b_ih"]
                 + h @ params["w_hh"].T + params["b_hh"])
        i_g, f_g, g_g, o_g = jnp.split(gates, 4, axis=-1)
        i_g = jax.nn.sigmoid(i_g)
        f_g = jax.nn.sigmoid(f_g)
        g_g = jnp.tanh(g_g)
        o_g = jax.nn.sigmoid(o_g)
        c = f_g * c + i_g * g_g
        h = o_g * jnp.tanh(c)
        return (h, c), h

    h0 = jnp.zeros((B, H), jnp.float32)
    c0 = jnp.zeros((B, H), jnp.float32)
    _, out = jax.lax.scan(step, (h0, c0), jnp.transpose(x, (1, 0, 2)))
    out = jnp.transpose(out, (1, 0, 2)).reshape(B, T * H)
    w_fc = params["w_fc"].astype(fc_weight_dtype).astype(jnp.float32)
    y = out @ w_fc.T + params["b_fc"]
    return jnp.maximum(y, 0.0)


if __name__ == "__main__":
    # Small shapes consistent with the module (original: T=529, H=256, I=16);
    # scaled down to T=8, H=32 for the smoke test.
    B, T, I, H, FC_OUT = 2, 8, 16, 32, 256

    key = jax.random.PRNGKey(0)
    kx, kp = jax.random.split(key)
    x = jax.random.normal(kx, (B, T, I), dtype=jnp.float32)
    params = init_params(kp, input_len=I, hidden_size=H, seq_len=T, fc_out=FC_OUT)

    y = lstmmodule_forward(x, params)
    jax.block_until_ready(y)

    y_ref = reference_forward(x, params)
    assert y.shape == (B, FC_OUT), y.shape
    max_err = float(jnp.max(jnp.abs(y - y_ref)))
    assert jnp.allclose(y, y_ref, atol=1e-3, rtol=1e-3), max_err

    print("KERNEL_OK")
</pallas_src>

<mosaic_0001>
module attributes {stable_mosaic.version = 11 : i64} {
  func.func @_lstm_kernel(%arg0: i32, %arg1: memref<16x16xf32, #tpu.memory_space<vmem>>, %arg2: memref<16x128xf32, #tpu.memory_space<vmem>>, %arg3: memref<32x128xf32, #tpu.memory_space<vmem>>, %arg4: memref<1x128xf32, #tpu.memory_space<vmem>>, %arg5: memref<8x2x32xf32, #tpu.memory_space<vmem>>, %arg6: memref<16x128xf32, #tpu.memory_space<vmem>>) attributes {dimension_semantics = [#tpu.dimension_semantics<arbitrary>], iteration_bounds = array<i64: 1>, scalar_prefetch = 0 : i64, scratch_operands = 1 : i64, tpu.core_type = #tpu.core_type<tc>, window_params = [{pipeline_mode = #tpu.pipeline_mode<synchronous>, transform_indices = @transform_0, window_bounds = array<i64: 16, 16>}, {pipeline_mode = #tpu.pipeline_mode<synchronous>, transform_indices = @transform_1, window_bounds = array<i64: 16, 128>}, {pipeline_mode = #tpu.pipeline_mode<synchronous>, transform_indices = @transform_2, window_bounds = array<i64: 32, 128>}, {pipeline_mode = #tpu.pipeline_mode<synchronous>, transform_indices = @transform_3, window_bounds = array<i64: 1, 128>}, {pipeline_mode = #tpu.pipeline_mode<synchronous>, transform_indices = @transform_4, window_bounds = array<i64: 8, 2, 32>}]} {
    %c0 = arith.constant 0 : index
    %c0_0 = arith.constant 0 : index
    %0 = vector.load %arg1[%c0, %c0_0] : memref<16x16xf32, #tpu.memory_space<vmem>>, vector<16x16xf32>
    %c0_1 = arith.constant 0 : index
    %c0_2 = arith.constant 0 : index
    %1 = vector.load %arg2[%c0_1, %c0_2] : memref<16x128xf32, #tpu.memory_space<vmem>>, vector<16x128xf32>
    %cst = arith.constant dense<0.000000e+00> : vector<16x128xf32>
    %2 = tpu.matmul %0, %1, %cst {dimension_numbers = #tpu.dot_dimension_numbers<[1], [0], [0], [1], [0, 0, 1, 1], [], []>} : vector<16x16xf32>, vector<16x128xf32>, vector<16x128xf32> -> vector<16x128xf32>
    %c0_3 = arith.constant 0 : index
    %c0_4 = arith.constant 0 : index
    %3 = vector.load %arg4[%c0_3, %c0_4] : memref<1x128xf32, #tpu.memory_space<vmem>>, vector<1x128xf32>
    %4 = vector.broadcast %3 : vector<1x128xf32> to vector<16x128xf32>
    %5 = arith.addf %2, %4 : vector<16x128xf32>
    %c0_5 = arith.constant 0 : index
    %c0_6 = arith.constant 0 : index
    %6 = vector.load %arg6[%c0_5, %c0_6] : memref<16x128xf32, #tpu.memory_space<vmem>>, vector<16x128xf32>
    tpu.vector_store %arg6[%c0_5, %c0_6], %5 {strides = array<i32>} : memref<16x128xf32, #tpu.memory_space<vmem>>, vector<16x128xf32>,
    %cst_7 = arith.constant 0.000000e+00 : f32
    %7 = vector.broadcast %cst_7 : f32 to vector<2x32xf32>
    %cst_8 = arith.constant 0.000000e+00 : f32
    %8 = vector.broadcast %cst_8 : f32 to vector<2x32xf32>
    %c0_i32 = arith.constant 0 : i32
    %c8_i32 = arith.constant 8 : i32
    %9 = arith.addi %c0_i32, %c8_i32 : i32
    %c1_i32 = arith.constant 1 : i32
    %10:2 = scf.for %arg7 = %c0_i32 to %9 step %c1_i32 iter_args(%arg8 = %7, %arg9 = %8) -> (vector<2x32xf32>, vector<2x32xf32>)  : i32 {
      %c2_i32 = arith.constant 2 : i32
      %11 = arith.muli %arg7, %c2_i32 : i32
      %12 = tpu.assume_multiple %11, 2 : i32
      %13 = arith.index_cast %12 : i32 to index
      %c0_10 = arith.constant 0 : index
      %14 = vector.load %arg6[%13, %c0_10] : memref<16x128xf32, #tpu.memory_space<vmem>>, vector<2x128xf32>
      %c0_11 = arith.constant 0 : index
      %c0_12 = arith.constant 0 : index
      %15 = vector.load %arg3[%c0_11, %c0_12] : memref<32x128xf32, #tpu.memory_space<vmem>>, vector<32x128xf32>
      %cst_13 = arith.constant dense<0.000000e+00> : vector<2x128xf32>
      %16 = tpu.matmul %arg8, %15, %cst_13 {dimension_numbers = #tpu.dot_dimension_numbers<[1], [0], [0], [1], [0, 0, 1, 1], [], []>} : vector<2x32xf32>, vector<32x128xf32>, vector<2x128xf32> -> vector<2x128xf32>
      %17 = arith.addf %14, %16 : vector<2x128xf32>
      %18 = vector.extract_strided_slice %17 {offsets = [0, 0], sizes = [2, 32], strides = [1, 1]} : vector<2x128xf32> to vector<2x32xf32>
      %19 = arith.negf %18 : vector<2x32xf32>
      %20 = math.exp %19 : vector<2x32xf32>
      %cst_14 = arith.constant 1.000000e+00 : f32
      %21 = vector.broadcast %cst_14 : f32 to vector<2x32xf32>
      %22 = arith.addf %21, %20 : vector<2x32xf32>
      %23 = arith.divf %21, %22 : vector<2x32xf32>
      %24 = vector.extract_strided_slice %17 {offsets = [0, 32], sizes = [2, 32], strides = [1, 1]} : vector<2x128xf32> to vector<2x32xf32>
      %25 = arith.negf %24 : vector<2x32xf32>
      %26 = math.exp %25 : vector<2x32xf32>
      %cst_15 = arith.constant 1.000000e+00 : f32
      %27 = vector.broadcast %cst_15 : f32 to vector<2x32xf32>
      %28 = arith.addf %27, %26 : vector<2x32xf32>
      %29 = arith.divf %27, %28 : vector<2x32xf32>
      %30 = vector.extract_strided_slice %17 {offsets = [0, 64], sizes = [2, 32], strides = [1, 1]} : vector<2x128xf32> to vector<2x32xf32>
      %31 = math.tanh %30 : vector<2x32xf32>
      %32 = vector.extract_strided_slice %17 {offsets = [0, 96], sizes = [2, 32], strides = [1, 1]} : vector<2x128xf32> to vector<2x32xf32>
      %33 = arith.negf %32 : vector<2x32xf32>
      %34 = math.exp %33 : vector<2x32xf32>
      %cst_16 = arith.constant 1.000000e+00 : f32
      %35 = vector.broadcast %cst_16 : f32 to vector<2x32xf32>
      %36 = arith.addf %35, %34 : vector<2x32xf32>
      %37 = arith.divf %35, %36 : vector<2x32xf32>
      %38 = arith.mulf %29, %arg9 : vector<2x32xf32>
      %39 = arith.mulf %23, %31 : vector<2x32xf32>
      %40 = arith.addf %38, %39 : vector<2x32xf32>
      %41 = math.tanh %40 : vector<2x32xf32>
      %42 = arith.mulf %37, %41 : vector<2x32xf32>
      %43 = arith.index_cast %arg7 : i32 to index
      %c0_17 = arith.constant 0 : index
      %c0_18 = arith.constant 0 : index
      %44 = vector.load %arg5[%43, %c0_17, %c0_18] : memref<8x2x32xf32, #tpu.memory_space<vmem>>, vector<1x2x32xf32>
      %45 = vector.shape_cast %44 : vector<1x2x32xf32> to vector<2x32xf32>
      %46 = vector.shape_cast %42 : vector<2x32xf32> to vector<1x2x32xf32>
      tpu.vector_store %arg5[%43, %c0_17, %c0_18], %46 {strides = array<i32>} : memref<8x2x32xf32, #tpu.memory_space<vmem>>, vector<1x2x32xf32>,
      scf.yield %42, %40 : vector<2x32xf32>, vector<2x32xf32>
    }
    %c8_i32_9 = arith.constant 8 : i32
    return
  }
  func.func @transform_0(%arg0: i32) -> (i32, i32) {
    %c0_i32 = arith.constant 0 : i32
    %c0_i32_0 = arith.constant 0 : i32
    %c0_i32_1 = arith.constant 0 : i32
    return %c0_i32, %c0_i32_0 : i32, i32
  }
  func.func @transform_1(%arg0: i32) -> (i32, i32) {
    %c0_i32 = arith.constant 0 : i32
    %c0_i32_0 = arith.constant 0 : i32
    %c0_i32_1 = arith.constant 0 : i32
    return %c0_i32, %c0_i32_0 : i32, i32
  }
  func.func @transform_2(%arg0: i32) -> (i32, i32) {
    %c0_i32 = arith.constant 0 : i32
    %c0_i32_0 = arith.constant 0 : i32
    %c0_i32_1 = arith.constant 0 : i32
    return %c0_i32, %c0_i32_0 : i32, i32
  }
  func.func @transform_3(%arg0: i32) -> (i32, i32) {
    %c0_i32 = arith.constant 0 : i32
    %c0_i32_0 = arith.constant 0 : i32
    %c0_i32_1 = arith.constant 0 : i32
    return %c0_i32, %c0_i32_0 : i32, i32
  }
  func.func @transform_4(%arg0: i32) -> (i32, i32, i32) {
    %c0_i32 = arith.constant 0 : i32
    %c0_i32_0 = arith.constant 0 : i32
    %c0_i32_1 = arith.constant 0 : i32
    %c0_i32_2 = arith.constant 0 : i32
    return %c0_i32, %c0_i32_0, %c0_i32_1 : i32, i32, i32
  }
}

module attributes {stable_mosaic.version = 11 : i64} {
  func.func @_fc_kernel(%arg0: i32, %arg1: i32, %arg2: memref<2x256xf32, #tpu.memory_space<vmem>>, %arg3: memref<256x128xbf16, #tpu.memory_space<vmem>>, %arg4: memref<1x128xf32, #tpu.memory_space<vmem>>, %arg5: memref<2x128xf32, #tpu.memory_space<vmem>>, %arg6: memref<2x128xf32, #tpu.memory_space<vmem>>) attributes {dimension_semantics = [#tpu.dimension_semantics<parallel>, #tpu.dimension_semantics<arbitrary>], iteration_bounds = array<i64: 2, 1>, scalar_prefetch = 0 : i64, scratch_operands = 1 : i64, tpu.core_type = #tpu.core_type<tc>, window_params = [{transform_indices = @transform_0, window_bounds = array<i64: 2, 256>}, {transform_indices = @transform_1, window_bounds = array<i64: 256, 128>}, {transform_indices = @transform_2, window_bounds = array<i64: 1, 128>}, {transform_indices = @transform_3, window_bounds = array<i64: 2, 128>}]} {
    %c0_i32 = arith.constant 0 : i32
    %0 = arith.cmpi eq, %arg1, %c0_i32 : i32
    %1 = arith.extui %0 : i1 to i32
    %c0_i32_0 = arith.constant 0 : i32
    %2 = arith.cmpi ne, %1, %c0_i32_0 : i32
    scf.if %2 {
      %cst_10 = arith.constant 0.000000e+00 : f32
      %13 = vector.broadcast %cst_10 : f32 to vector<2x128xf32>
      %c0_11 = arith.constant 0 : index
      %c0_12 = arith.constant 0 : index
      %14 = vector.load %arg6[%c0_11, %c0_12] : memref<2x128xf32, #tpu.memory_space<vmem>>, vector<2x128xf32>
      tpu.vector_store %arg6[%c0_11, %c0_12], %13 {strides = array<i32>} : memref<2x128xf32, #tpu.memory_space<vmem>>, vector<2x128xf32>,
    } else {
    }
    %c0 = arith.constant 0 : index
    %c0_1 = arith.constant 0 : index
    %3 = vector.load %arg6[%c0, %c0_1] : memref<2x128xf32, #tpu.memory_space<vmem>>, vector<2x128xf32>
    %c0_2 = arith.constant 0 : index
    %c0_3 = arith.constant 0 : index
    %4 = vector.load %arg2[%c0_2, %c0_3] : memref<2x256xf32, #tpu.memory_space<vmem>>, vector<2x256xf32>
    %c0_4 = arith.constant 0 : index
    %c0_5 = arith.constant 0 : index
    %5 = vector.load %arg3[%c0_4, %c0_5] : memref<256x128xbf16, #tpu.memory_space<vmem>>, vector<256x128xbf16>
    %6 = arith.extf %5 : vector<256x128xbf16> to vector<256x128xf32>
    %cst = arith.constant dense<0.000000e+00> : vector<2x128xf32>
    %7 = tpu.matmul %4, %6, %cst {dimension_numbers = #tpu.dot_dimension_numbers<[1], [0], [0], [1], [0, 0, 1, 1], [], []>} : vector<2x256xf32>, vector<256x128xf32>, vector<2x128xf32> -> vector<2x128xf32>
    %8 = arith.addf %3, %7 : vector<2x128xf32>
    %c0_6 = arith.constant 0 : index
    %c0_7 = arith.constant 0 : index
    %9 = vector.load %arg6[%c0_6, %c0_7] : memref<2x128xf32, #tpu.memory_space<vmem>>, vector<2x128xf32>
    tpu.vector_store %arg6[%c0_6, %c0_7], %8 {strides = array<i32>} : memref<2x128xf32, #tpu.memory_space<vmem>>, vector<2x128xf32>,
    %c0_i32_8 = arith.constant 0 : i32
    %10 = arith.cmpi eq, %arg1, %c0_i32_8 : i32
    %11 = arith.extui %10 : i1 to i32
    %c0_i32_9 = arith.constant 0 : i32
    %12 = arith.cmpi ne, %11, %c0_i32_9 : i32
    scf.if %12 {
      %c0_10 = arith.constant 0 : index
      %c0_11 = arith.constant 0 : index
      %13 = vector.load %arg6[%c0_10, %c0_11] : memref<2x128xf32, #tpu.memory_space<vmem>>, vector<2x128xf32>
      %c0_12 = arith.constant 0 : index
      %c0_13 = arith.constant 0 : index
      %14 = vector.load %arg4[%c0_12, %c0_13] : memref<1x128xf32, #tpu.memory_space<vmem>>, vector<1x128xf32>
      %15 = vector.broadcast %14 : vector<1x128xf32> to vector<2x128xf32>
      %16 = arith.addf %13, %15 : vector<2x128xf32>
      %cst_14 = arith.constant 0.000000e+00 : f32
      %17 = vector.broadcast %cst_14 : f32 to vector<2x128xf32>
      %18 = arith.maximumf %16, %17 : vector<2x128xf32>
      %c0_15 = arith.constant 0 : index
      %c0_16 = arith.constant 0 : index
      %19 = vector.load %arg5[%c0_15, %c0_16] : memref<2x128xf32, #tpu.memory_space<vmem>>, vector<2x128xf32>
      tpu.vector_store %arg5[%c0_15, %c0_16], %18 {strides = array<i32>} : memref<2x128xf32, #tpu.memory_space<vmem>>, vector<2x128xf32>,
    } else {
    }
    return
  }
  func.func @transform_0(%arg0: i32, %arg1: i32) -> (i32, i32) {
    %c0_i32 = arith.constant 0 : i32
    %c0_i32_0 = arith.constant 0 : i32
    return %c0_i32, %arg1 : i32, i32
  }
  func.func @transform_1(%arg0: i32, %arg1: i32) -> (i32, i32) {
    %c0_i32 = arith.constant 0 : i32
    return %arg1, %arg0 : i32, i32
  }
  func.func @transform_2(%arg0: i32, %arg1: i32) -> (i32, i32) {
    %c0_i32 = arith.constant 0 : i32
    %c0_i32_0 = arith.constant 0 : i32
    return %c0_i32, %arg0 : i32, i32
  }
  func.func @transform_3(%arg0: i32, %arg1: i32) -> (i32, i32) {
    %c0_i32 = arith.constant 0 : i32
    %c0_i32_0 = arith.constant 0 : i32
    return %c0_i32, %arg0 : i32, i32
  }
}

</mosaic_0001>

<llo_original>
// kernel: lstmmodule_forward.3
$region0: #{lstmmodule_forward.3}
  #allocation0 [shape = 'u32[]', space=smem, size = 0x4, offset = 0x4, fixed_abs, tag = 'smem constant byte address 0x4 - core index']
  #allocation1 [shape = 'u32[144,128]{1,0:T(1,128)}', space=vmem, size = 0x12000, scoped, tag = 'internal scratch']
  #allocation2 [shape = 'f32[2,128]{1,0:T(2,128)}', space=vmem, size = 0x400, scoped, tag = 'scratch operand']
  %s0 = inlined_call_operand.vmem [shape: f32[2,256], index: 0, kind: input, shape index: {}]
  %s1 = inlined_call_operand.vmem [shape: bf16[256,256], index: 1, kind: input, shape index: {}]
  %s2 = inlined_call_operand.vmem [shape: f32[1,256], index: 2, kind: input, shape index: {}]
  %s3 = inlined_call_operand.hbm [shape: f32[2,256], index: 3, kind: output, shape index: {}]
  %s4 = sld [smem:[#allocation0]]
  $region94: #{lstmmodule_forward.3} parent=0
    _
  %s6 = ssub.s32 1, %s4
  %s7 = scalar_select 0, %s6, %s4
  $region1: #{lstmmodule_forward.3} parent=0
    #allocation3 [shape = 'u8[131072]{0}', space=vmem, size = 0x20000, scoped, tag = 'input window, operand 1']
    #allocation4 [shape = 'u8[2048]{0}', space=vmem, size = 0x800, scoped, tag = 'output window, operand 0']
    #allocation5 [shape = 's32[2]{0}', space=sflag, size = 0x8, scoped, tag = 'scoped memory for lstmmodule_forward.3']
    %8 = vsyncpa [#allocation5], 0
    %s9 = scalar_lea.sflag [#allocation5], 1
    %10 = vsyncpa %s9, 0
    loop: start=0, step=1, limit=4
    $region2: #{lstmmodule_forward.3} parent=1 // loop_pre_header
      _
    $region3: #{lstmmodule_forward.3} parent=1 // loop_header
      %s12 = sphi 0, %s16
      %p13 = scmp.ge.s32.totalorder %s12, 4
      %s19 = sphi 0, %s31
      %s20 = sphi 0, %s27
      %s21 = sphi 0, %s19
      %s22 = sphi 0, %s20
      %s23 = sphi 0, %s21
      %s24 = sphi 0, %s22
      %s34 = sphi 0, %s36
      %s37 = sphi 0, %s34
      %s38 = sphi 0, %s37
      %s54 = sphi 0, %s38
      %s62 = sphi 0, %s64
      %s65 = sphi 0, %s62
      %s66 = sphi 0, %s65
      %s82 = sphi 0, %s66
      %s88 = sphi 0, %s90
      %s91 = sphi 0, %s88
      %s92 = sphi 0, %s91
      %s108 = sphi 0, %s92
      %s114 = sphi 0, %s116
      %s117 = sphi 0, %s114
      %s118 = sphi 0, %s117
      %s134 = sphi 0, %s118
    $region4: #{lstmmodule_forward.3} parent=1 // loop_header_branch
      %15 = sbr.rel (%p13) target = $region8
    $region5: #{lstmmodule_forward.3} parent=1 // loop_body
      %s17 = ssub.s32 %s12, 1
      %s18 = ssub.s32 %s12, 2
      %s25 = sadd.s32 1, %s20
      %p26 = scmp.ge.s32.totalorder %s25, 1
      %s27 = scalar_select %p26, 0, %s25
      %s28 = sadd.s32 1, %s19
      %s29 = scalar_select %p26, %s28, %s19
      %p30 = scmp.ge.s32.totalorder %s29, 2
      %s31 = scalar_select %p30, 0, %s29
      %s32 = ssub.s32 %s20, %s27
      %p33 = scmp.eq.s32.totalorder %s32, 0
      %s35 = sadd.s32 %s34, 1
      %s36 = scalar_select %p33, %s34, %s35
      %p39 = pneg %p33
      %p40 = scmp.eq.s32.totalorder %s12, 1
      %p41 = por %p39, %p40
      %p42 = scmp.ne.s32.totalorder %s34, %s37
      %p43 = scmp.eq.s32.totalorder %s12, 0
      %p44 = por %p42, %p43
      %p45 = scmp.ne.s32.totalorder %s34, %s37
      %p46 = scmp.eq.s32.totalorder %s17, 1
      %p47 = por %p45, %p46
      %p48 = scmp.ne.s32.totalorder %s37, %s38
      %p49 = scmp.eq.s32.totalorder %s17, 0
      %p50 = por %p48, %p49
      %p51 = scmp.ne.s32.totalorder %s37, %s38
      %p52 = scmp.eq.s32.totalorder %s18, 1
      %p53 = por %p51, %p52
      %p55 = scmp.ne.s32.totalorder %s38, %s54
      %p56 = scmp.eq.s32.totalorder %s18, 0
      %p57 = por %p55, %p56
      %s58 = ssub.s32 %s20, %s27
      %s59 = ssub.s32 %s19, %s31
      %s60 = sor.u32 %s58, %s59
      %p61 = scmp.eq.s32.totalorder %s60, 0
      %s63 = sadd.s32 %s62, 1
      %s64 = scalar_select %p61, %s62, %s63
      %p67 = pneg %p61
      %p68 = scmp.eq.s32.totalorder %s12, 1
      %p69 = por %p67, %p68
      %p70 = scmp.ne.s32.totalorder %s62, %s65
      %p71 = scmp.eq.s32.totalorder %s12, 0
      %p72 = por %p70, %p71
      %p73 = scmp.ne.s32.totalorder %s62, %s65
      %p74 = scmp.eq.s32.totalorder %s17, 1
      %p75 = por %p73, %p74
      %p76 = scmp.ne.s32.totalorder %s65, %s66
      %p77 = scmp.eq.s32.totalorder %s17, 0
      %p78 = por %p76, %p77
      %p79 = scmp.ne.s32.totalorder %s65, %s66
      %p80 = scmp.eq.s32.totalorder %s18, 1
      %p81 = por %p79, %p80
      %p83 = scmp.ne.s32.totalorder %s66, %s82
      %p84 = scmp.eq.s32.totalorder %s18, 0
      %p85 = por %p83, %p84
      %s86 = ssub.s32 %s19, %s31
      %p87 = scmp.eq.s32.totalorder %s86, 0
      %s89 = sadd.s32 %s88, 1
      %s90 = scalar_select %p87, %s88, %s89
      %p93 = pneg %p87
      %p94 = scmp.eq.s32.totalorder %s12, 1
      %p95 = por %p93, %p94
      %p96 = scmp.ne.s32.totalorder %s88, %s91
      %p97 = scmp.eq.s32.totalorder %s12, 0
      %p98 = por %p96, %p97
      %p99 = scmp.ne.s32.totalorder %s88, %s91
      %p100 = scmp.eq.s32.totalorder %s17, 1
      %p101 = por %p99, %p100
      %p102 = scmp.ne.s32.totalorder %s91, %s92
      %p103 = scmp.eq.s32.totalorder %s17, 0
      %p104 = por %p102, %p103
      %p105 = scmp.ne.s32.totalorder %s91, %s92
      %p106 = scmp.eq.s32.totalorder %s18, 1
      %p107 = por %p105, %p106
      %p109 = scmp.ne.s32.totalorder %s92, %s108
      %p110 = scmp.eq.s32.totalorder %s18, 0
      %p111 = por %p109, %p110
      %s112 = ssub.s32 %s19, %s31
      %p113 = scmp.eq.s32.totalorder %s112, 0
      %s115 = sadd.s32 %s114, 1
      %s116 = scalar_select %p113, %s114, %s115
      %p119 = pneg %p113
      %p120 = scmp.eq.s32.totalorder %s12, 1
      %p121 = por %p119, %p120
      %p122 = scmp.ne.s32.totalorder %s114, %s117
      %p123 = scmp.eq.s32.totalorder %s12, 0
      %p124 = por %p122, %p123
      %p125 = scmp.ne.s32.totalorder %s114, %s117
      %p126 = scmp.eq.s32.totalorder %s17, 1
      %p127 = por %p125, %p126
      %p128 = scmp.ne.s32.totalorder %s117, %s118
      %p129 = scmp.eq.s32.totalorder %s17, 0
      %p130 = por %p128, %p129
      %p131 = scmp.ne.s32.totalorder %s117, %s118
      %p132 = scmp.eq.s32.totalorder %s18, 1
      %p133 = por %p131, %p132
      %p135 = scmp.ne.s32.totalorder %s118, %s134
      %p136 = scmp.eq.s32.totalorder %s18, 0
      %p137 = por %p135, %p136
      %p138 = scmp.le.s32.totalorder 1, %s12
      %p139 = scmp.lt.s32.totalorder %s12, 3
      %p140 = pnand %p138, %p139
      %p141 = pneg %p140
      // Predicated region
      $region9: #{lstmmodule_forward.3} parent=5 // pred_check
        _
      $region10: #{lstmmodule_forward.3} parent=5 // pred_check_branch
        %143 = sbr.rel (%p140) target = $region12
      $region11: #{lstmmodule_forward.3} parent=5 // pred_region
        %s144 = ssub.s32 %s12, 1
        // Predicated region
        $region13: #{lstmmodule_forward.3} parent=11 // pred_check
          %p145 = pneg %p50
        $region14: #{lstmmodule_forward.3} parent=11 // pred_check_branch
          %147 = sbr.rel (%p145) target = $region16
        $region15: #{lstmmodule_forward.3} parent=11 // pred_region
          %s148 = smul.u32 2, %s22
          %p149 = scmp.lt.s32.totalorder %s148, 1
          %s150 = scalar_select %p149, %s148, 1
          %s151 = smul.addr %s150, 2
          %s152 = scalar_lea.vmem %s0, %s151
          %s153 = smul.u32 2, %s22
        $region16: #{lstmmodule_forward.3} parent=11 // pred_fallthru
          _
      $region12: #{lstmmodule_forward.3} parent=5 // pred_fallthru
        _
      %p154 = scmp.lt.s32.totalorder %s12, 2
      // Predicated region
      $region17: #{lstmmodule_forward.3} parent=5 // pred_check
        %p155 = pneg %p154
      $region18: #{lstmmodule_forward.3} parent=5 // pred_check_branch
        %157 = sbr.rel (%p155) target = $region20
      $region19: #{lstmmodule_forward.3} parent=5 // pred_region
        // Predicated region
        $region21: #{lstmmodule_forward.3} parent=19 // pred_check
          %p158 = pneg %p72
        $region22: #{lstmmodule_forward.3} parent=19 // pred_check_branch
          %160 = sbr.rel (%p158) target = $region24
        $region23: #{lstmmodule_forward.3} parent=19 // pred_region
          %s161 = sand.u32 %s62, 1
          %s162 = sand.u32 %s62, 1
          %s163 = smul.addr %s162, 128
          %s164 = scalar_lea.vmem [#allocation3], %s163
          %s165 = smul.u32 32, %s20
          %s166 = smul.addr %s165, 2
          %s167 = sadd.s32 %s19, %s166
          %s168 = smul.addr %s167, 4
          %s169 = scalar_lea.vmem %s1, %s168
          // Predicated region
          $region25: #{lstmmodule_forward.3} parent=23 // pred_check
            _
          $region26: #{lstmmodule_forward.3} parent=23 // pred_check_branch
            %171 = sbr.rel (0) target = $region28
          $region27: #{lstmmodule_forward.3} parent=23 // pred_region
            // Predicated region
            $region29: #{lstmmodule_forward.3} parent=27 // pred_check
              _
            $region30: #{lstmmodule_forward.3} parent=27 // pred_check_branch
              %173 = sbr.rel target = $region32
            $region31: #{lstmmodule_forward.3} parent=27 // pred_region
              // Predicated region
              $region44: #{lstmmodule_forward.3} parent=31 // pred_check
                _
              $region45: #{lstmmodule_forward.3} parent=31 // pred_check_branch
                %250 = sbr.rel (0) target = $region47
              $region46: #{lstmmodule_forward.3} parent=31 // pred_region
                loop: start=0, step=1, limit=1
                $region48: #{lstmmodule_forward.3} parent=46 // loop_pre_header
                  _
                $region49: #{lstmmodule_forward.3} parent=46 // loop_header
                  %s252 = sphi 0, %s256
                  %p253 = scmp.ge.s32.totalorder %s252, 1
                  %s257 = sphi %s169, %s169
                  %s258 = sphi %s164, %s164
                $region50: #{lstmmodule_forward.3} parent=46 // loop_header_branch
                  %255 = sbr.rel (%p253) target = $region54
                $region51: #{lstmmodule_forward.3} parent=46 // loop_body
                  _
                $region52: #{lstmmodule_forward.3} parent=46 // loop_footer
                  %s256 = sadd.s32 1, %s252
                $region53: #{lstmmodule_forward.3} parent=46 // loop_footer_branch
                  %251 = sbr.rel target = $region49
                $region54: #{lstmmodule_forward.3} parent=46 // loop_exit
                  _
                loop: start=0, step=1, limit=1
                $region55: #{lstmmodule_forward.3} parent=46 // loop_pre_header
                  _
                $region56: #{lstmmodule_forward.3} parent=46 // loop_header
                  %s261 = sphi 0, %s265
                  %p262 = scmp.ge.s32.totalorder %s261, 1
                  %s266 = sphi %s169, %s169
                  %s267 = sphi %s164, %s164
                $region57: #{lstmmodule_forward.3} parent=46 // loop_header_branch
                  %264 = sbr.rel (%p262) target = $region61
                $region58: #{lstmmodule_forward.3} parent=46 // loop_body
                  %v268 = vld [vmem:[%s266] sm:$0xf]
                  %269 = vst [vmem:[%s267] sm:$0xf] %v268
                  %v270 = vld [vmem:[%s266 + $0x8] sm:$0xf]
                  %271 = vst [vmem:[%s267 + $0x4] sm:$0xf] %v270
                  %v272 = vld [vmem:[%s266 + $0x10] sm:$0xf]
                  %273 = vst [vmem:[%s267 + $0x8] sm:$0xf] %v272
                  %v274 = vld [vmem:[%s266 + $0x18] sm:$0xf]
                  %275 = vst [vmem:[%s267 + $0xc] sm:$0xf] %v274
                  %v276 = vld [vmem:[%s266 + $0x20] sm:$0xf]
                  %277 = vst [vmem:[%s267 + $0x10] sm:$0xf] %v276
                  %v278 = vld [vmem:[%s266 + $0x28] sm:$0xf]
                  %279 = vst [vmem:[%s267 + $0x14] sm:$0xf] %v278
                  %v280 = vld [vmem:[%s266 + $0x30] sm:$0xf]
                  %281 = vst [vmem:[%s267 + $0x18] sm:$0xf] %v280
                  %v282 = vld [vmem:[%s266 + $0x38] sm:$0xf]
                  %283 = vst [vmem:[%s267 + $0x1c] sm:$0xf] %v282
                  %v284 = vld [vmem:[%s266 + $0x40] sm:$0xf]
                  %285 = vst [vmem:[%s267 + $0x20] sm:$0xf] %v284
                  %v286 = vld [vmem:[%s266 + $0x48] sm:$0xf]
                  %287 = vst [vmem:[%s267 + $0x24] sm:$0xf] %v286
                  %v288 = vld [vmem:[%s266 + $0x50] sm:$0xf]
                  %289 = vst [vmem:[%s267 + $0x28] sm:$0xf] %v288
                  %v290 = vld [vmem:[%s266 + $0x58] sm:$0xf]
                  %291 = vst [vmem:[%s267 + $0x2c] sm:$0xf] %v290
                  %v292 = vld [vmem:[%s266 + $0x60] sm:$0xf]
                  %293 = vst [vmem:[%s267 + $0x30] sm:$0xf] %v292
                  %v294 = vld [vmem:[%s266 + $0x68] sm:$0xf]
                  %295 = vst [vmem:[%s267 + $0x34] sm:$0xf] %v294
                  %v296 = vld [vmem:[%s266 + $0x70] sm:$0xf]
                  %297 = vst [vmem:[%s267 + $0x38] sm:$0xf] %v296
                  %v298 = vld [vmem:[%s266 + $0x78] sm:$0xf]
                  %299 = vst [vmem:[%s267 + $0x3c] sm:$0xf] %v298
                  %v300 = vld [vmem:[%s266 + $0x80] sm:$0xf]
                  %301 = vst [vmem:[%s267 + $0x40] sm:$0xf] %v300
                  %v302 = vld [vmem:[%s266 + $0x88] sm:$0xf]
                  %303 = vst [vmem:[%s267 + $0x44] sm:$0xf] %v302
                  %v304 = vld [vmem:[%s266 + $0x90] sm:$0xf]
                  %305 = vst [vmem:[%s267 + $0x48] sm:$0xf] %v304
                  %v306 = vld [vmem:[%s266 + $0x98] sm:$0xf]
                  %307 = vst [vmem:[%s267 + $0x4c] sm:$0xf] %v306
                  %v308 = vld [vmem:[%s266 + $0xa0] sm:$0xf]
                  %309 = vst [vmem:[%s267 + $0x50] sm:$0xf] %v308
                  %v310 = vld [vmem:[%s266 + $0xa8] sm:$0xf]
                  %311 = vst [vmem:[%s267 + $0x54] sm:$0xf] %v310
                  %v312 = vld [vmem:[%s266 + $0xb0] sm:$0xf]
                  %313 = vst [vmem:[%s267 + $0x58] sm:$0xf] %v312
                  %v314 = vld [vmem:[%s266 + $0xb8] sm:$0xf]
                  %315 = vst [vmem:[%s267 + $0x5c] sm:$0xf] %v314
                  %v316 = vld [vmem:[%s266 + $0xc0] sm:$0xf]
                  %317 = vst [vmem:[%s267 + $0x60] sm:$0xf] %v316
                  %v318 = vld [vmem:[%s266 + $0xc8] sm:$0xf]
                  %319 = vst [vmem:[%s267 + $0x64] sm:$0xf] %v318
                  %v320 = vld [vmem:[%s266 + $0xd0] sm:$0xf]
                  %321 = vst [vmem:[%s267 + $0x68] sm:$0xf] %v320
                  %v322 = vld [vmem:[%s266 + $0xd8] sm:$0xf]
                  %323 = vst [vmem:[%s267 + $0x6c] sm:$0xf] %v322
                  %v324 = vld [vmem:[%s266 + $0xe0] sm:$0xf]
                  %325 = vst [vmem:[%s267 + $0x70] sm:$0xf] %v324
                  %v326 = vld [vmem:[%s266 + $0xe8] sm:$0xf]
                  %327 = vst [vmem:[%s267 + $0x74] sm:$0xf] %v326
                  %v328 = vld [vmem:[%s266 + $0xf0] sm:$0xf]
                  %329 = vst [vmem:[%s267 + $0x78] sm:$0xf] %v328
                  %v330 = vld [vmem:[%s266 + $0xf8] sm:$0xf]
                  %331 = vst [vmem:[%s267 + $0x7c] sm:$0xf] %v330
                $region59: #{lstmmodule_forward.3} parent=46 // loop_footer
                  %s265 = sadd.s32 1, %s261
                $region60: #{lstmmodule_forward.3} parent=46 // loop_footer_branch
                  %260 = sbr.rel target = $region56
                $region61: #{lstmmodule_forward.3} parent=46 // loop_exit
                  _
              $region47: #{lstmmodule_forward.3} parent=31 // pred_fallthru
                _
            $region32: #{lstmmodule_forward.3} parent=27 // pred_fallthru
              _
            // Predicated region
            $region33: #{lstmmodule_forward.3} parent=27 // pred_check
              _
            $region34: #{lstmmodule_forward.3} parent=27 // pred_check_branch
              %175 = sbr.rel (0) target = $region36
            $region35: #{lstmmodule_forward.3} parent=27 // pred_region
              loop: start=0, step=1, limit=1
              $region37: #{lstmmodule_forward.3} parent=35 // loop_pre_header
                _
              $region38: #{lstmmodule_forward.3} parent=35 // loop_header
                %s178 = sphi 0, %s182
                %p179 = scmp.ge.s32.totalorder %s178, 1
                %s183 = sphi %s169, %s169
                %s184 = sphi %s164, %s164
              $region39: #{lstmmodule_forward.3} parent=35 // loop_header_branch
                %181 = sbr.rel (%p179) target = $region43
              $region40: #{lstmmodule_forward.3} parent=35 // loop_body
                %v185 = vld [vmem:[%s183] sm:$0xf]
                %186 = vst [vmem:[%s184] sm:$0xf] %v185
                %v187 = vld [vmem:[%s183 + $0x8] sm:$0xf]
                %188 = vst [vmem:[%s184 + $0x4] sm:$0xf] %v187
                %v189 = vld [vmem:[%s183 + $0x10] sm:$0xf]
                %190 = vst [vmem:[%s184 + $0x8] sm:$0xf] %v189
                %v191 = vld [vmem:[%s183 + $0x18] sm:$0xf]
                %192 = vst [vmem:[%s184 + $0xc] sm:$0xf] %v191
                %v193 = vld [vmem:[%s183 + $0x20] sm:$0xf]
                %194 = vst [vmem:[%s184 + $0x10] sm:$0xf] %v193
                %v195 = vld [vmem:[%s183 + $0x28] sm:$0xf]
                %196 = vst [vmem:[%s184 + $0x14] sm:$0xf] %v195
                %v197 = vld [vmem:[%s183 + $0x30] sm:$0xf]
                %198 = vst [vmem:[%s184 + $0x18] sm:$0xf] %v197
                %v199 = vld [vmem:[%s183 + $0x38] sm:$0xf]
                %200 = vst [vmem:[%s184 + $0x1c] sm:$0xf] %v199
                %v201 = vld [vmem:[%s183 + $0x40] sm:$0xf]
                %202 = vst [vmem:[%s184 + $0x20] sm:$0xf] %v201
                %v203 = vld [vmem:[%s183 + $0x48] sm:$0xf]
                %204 = vst [vmem:[%s184 + $0x24] sm:$0xf] %v203
                %v205 = vld [vmem:[%s183 + $0x50] sm:$0xf]
                %206 = vst [vmem:[%s184 + $0x28] sm:$0xf] %v205
                %v207 = vld [vmem:[%s183 + $0x58] sm:$0xf]
                %208 = vst [vmem:[%s184 + $0x2c] sm:$0xf] %v207
                %v209 = vld [vmem:[%s183 + $0x60] sm:$0xf]
                %210 = vst [vmem:[%s184 + $0x30] sm:$0xf] %v209
                %v211 = vld [vmem:[%s183 + $0x68] sm:$0xf]
                %212 = vst [vmem:[%s184 + $0x34] sm:$0xf] %v211
                %v213 = vld [vmem:[%s183 + $0x70] sm:$0xf]
                %214 = vst [vmem:[%s184 + $0x38] sm:$0xf] %v213
                %v215 = vld [vmem:[%s183 + $0x78] sm:$0xf]
                %216 = vst [vmem:[%s184 + $0x3c] sm:$0xf] %v215
                %v217 = vld [vmem:[%s183 + $0x80] sm:$0xf]
                %218 = vst [vmem:[%s184 + $0x40] sm:$0xf] %v217
                %v219 = vld [vmem:[%s183 + $0x88] sm:$0xf]
                %220 = vst [vmem:[%s184 + $0x44] sm:$0xf] %v219
                %v221 = vld [vmem:[%s183 + $0x90] sm:$0xf]
                %222 = vst [vmem:[%s184 + $0x48] sm:$0xf] %v221
                %v223 = vld [vmem:[%s183 + $0x98] sm:$0xf]
                %224 = vst [vmem:[%s184 + $0x4c] sm:$0xf] %v223
                %v225 = vld [vmem:[%s183 + $0xa0] sm:$0xf]
                %226 = vst [vmem:[%s184 + $0x50] sm:$0xf] %v225
                %v227 = vld [vmem:[%s183 + $0xa8] sm:$0xf]
                %228 = vst [vmem:[%s184 + $0x54] sm:$0xf] %v227
                %v229 = vld [vmem:[%s183 + $0xb0] sm:$0xf]
                %230 = vst [vmem:[%s184 + $0x58] sm:$0xf] %v229
                %v231 = vld [vmem:[%s183 + $0xb8] sm:$0xf]
                %232 = vst [vmem:[%s184 + $0x5c] sm:$0xf] %v231
                %v233 = vld [vmem:[%s183 + $0xc0] sm:$0xf]
                %234 = vst [vmem:[%s184 + $0x60] sm:$0xf] %v233
                %v235 = vld [vmem:[%s183 + $0xc8] sm:$0xf]
                %236 = vst [vmem:[%s184 + $0x64] sm:$0xf] %v235
                %v237 = vld [vmem:[%s183 + $0xd0] sm:$0xf]
                %238 = vst [vmem:[%s184 + $0x68] sm:$0xf] %v237
                %v239 = vld [vmem:[%s183 + $0xd8] sm:$0xf]
                %240 = vst [vmem:[%s184 + $0x6c] sm:$0xf] %v239
                %v241 = vld [vmem:[%s183 + $0xe0] sm:$0xf]
                %242 = vst [vmem:[%s184 + $0x70] sm:$0xf] %v241
                %v243 = vld [vmem:[%s183 + $0xe8] sm:$0xf]
                %244 = vst [vmem:[%s184 + $0x74] sm:$0xf] %v243
                %v245 = vld [vmem:[%s183 + $0xf0] sm:$0xf]
                %246 = vst [vmem:[%s184 + $0x78] sm:$0xf] %v245
                %v247 = vld [vmem:[%s183 + $0xf8] sm:$0xf]
                %248 = vst [vmem:[%s184 + $0x7c] sm:$0xf] %v247
              $region41: #{lstmmodule_forward.3} parent=35 // loop_footer
                %s182 = sadd.s32 1, %s178
              $region42: #{lstmmodule_forward.3} parent=35 // loop_footer_branch
                %177 = sbr.rel target = $region38
              $region43: #{lstmmodule_forward.3} parent=35 // loop_exit
                _
            $region36: #{lstmmodule_forward.3} parent=27 // pred_fallthru
              _
          $region28: #{lstmmodule_forward.3} parent=23 // pred_fallthru
            _
          %332 = vnop
        $region24: #{lstmmodule_forward.3} parent=19 // pred_fallthru
          _
        // Predicated region
        $region62: #{lstmmodule_forward.3} parent=19 // pred_check
          %p333 = pneg %p98
        $region63: #{lstmmodule_forward.3} parent=19 // pred_check_branch
          %335 = sbr.rel (%p333) target = $region65
        $region64: #{lstmmodule_forward.3} parent=19 // pred_region
          %p336 = scmp.lt.s32.totalorder %s19, 1
          %s337 = scalar_select %p336, %s19, 1
          %s338 = scalar_lea.vmem %s2, %s337
        $region65: #{lstmmodule_forward.3} parent=19 // pred_fallthru
          _
      $region20: #{lstmmodule_forward.3} parent=5 // pred_fallthru
        _
      %p339 = scmp.le.s32.totalorder 1, %s12
      %p340 = scmp.lt.s32.totalorder %s12, 3
      %p341 = pnand %p339, %p340
      %p342 = pneg %p341
      // Predicated region
      $region66: #{lstmmodule_forward.3} parent=5 // pred_check
        _
      $region67: #{lstmmodule_forward.3} parent=5 // pred_check_branch
        %344 = sbr.rel (%p341) target = $region69
      $region68: #{lstmmodule_forward.3} parent=5 // pred_region
        %s345 = ssub.s32 %s12, 1
        %s346 = sand.u32 %s65, 1
        %s347 = sand.u32 %s65, 1
        %s348 = smul.addr %s347, 128
        %s349 = scalar_lea.vmem [#allocation3], %s348
        // Predicated region
        $region70: #{lstmmodule_forward.3} parent=68 // pred_check
          %p350 = pneg %p78
        $region71: #{lstmmodule_forward.3} parent=68 // pred_check_branch
          %352 = sbr.rel (%p350) target = $region73
        $region72: #{lstmmodule_forward.3} parent=68 // pred_region
          _
        $region73: #{lstmmodule_forward.3} parent=68 // pred_fallthru
          _
        %s353 = smul.u32 2, %s22
        %p354 = scmp.lt.s32.totalorder %s353, 1
        %s355 = scalar_select %p354, %s353, 1
        %s356 = smul.addr %s355, 2
        %s357 = scalar_lea.vmem %s0, %s356
        %p358 = pneg %p50
        %p359 = pneg %p47
        %s360 = sand.u32 %s65, 1
        %s361 = sand.u32 %s65, 1
        %s362 = smul.addr %s361, 128
        %s363 = scalar_lea.vmem [#allocation3], %s362
        %p364 = pneg %p78
        %p365 = pneg %p75
        %p366 = scmp.lt.s32.totalorder %s21, 1
        %s367 = scalar_select %p366, %s21, 1
        %s368 = scalar_lea.vmem %s2, %s367
        %p369 = pneg %p104
        %p370 = pneg %p101
        %p371 = pneg %p130
        %p372 = pneg %p127
        %s373 = sand.u32 %s117, 1
        %s374 = scalar_lea.sflag [#allocation5], %s373
        %s375 = sand.u32 %s117, 1
        %s376 = smul.addr %s375, 2
        %s377 = scalar_lea.vmem [#allocation4], %s376
        %s378 = smul.u32 2, %s22
        %p379 = scmp.lt.s32.totalorder %s378, 1
        %s380 = scalar_select %p379, %s378, 1
        %s381 = smul.addr %s380, 2
        %s382 = scalar_lea.vmem %s0, %s381
        %s383 = smul.u32 2, %s22
        %s384 = smul.u32 32, %s22
        %p385 = scmp.lt.s32.totalorder %s21, 1
        %s386 = scalar_select %p385, %s21, 1
        %s387 = scalar_lea.vmem %s2, %s386
        %p388 = scmp.eq.s32.totalorder %s22, 0
        // Predicated region
        $region74: #{lstmmodule_forward.3} parent=68 // pred_check
          %p389 = pneg %p388
        $region75: #{lstmmodule_forward.3} parent=68 // pred_check_branch
          %391 = sbr.rel (%p389) target = $region77
        $region76: #{lstmmodule_forward.3} parent=68 // pred_region
          %392 = vst [vmem:[#allocation2] sm:$0x3] 0.0
        $region77: #{lstmmodule_forward.3} parent=68 // pred_fallthru
          _
        %v393 = vld [vmem:[#allocation2] sm:$0x3]
        %v394 = vld [vmem:[%s382] sm:$0xf]
        %v395 = vld [vmem:[%s349] sm:$0xf]
        %v396 = vld [vmem:[%s349 + $0x4] sm:$0xf]
        %v397 = vld [vmem:[%s349 + $0x8] sm:$0xf]
        %v398 = vld [vmem:[%s349 + $0xc] sm:$0xf]
        %v399 = vld [vmem:[%s349 + $0x10] sm:$0xf]
        %v400 = vld [vmem:[%s349 + $0x14] sm:$0xf]
        %v401 = vld [vmem:[%s349 + $0x18] sm:$0xf]
        %v402 = vld [vmem:[%s349 + $0x1c] sm:$0xf]
        %v403 = vld [vmem:[%s349 + $0x20] sm:$0xf]
        %v404 = vld [vmem:[%s349 + $0x24] sm:$0xf]
        %v405 = vld [vmem:[%s349 + $0x28] sm:$0xf]
        %v406 = vld [vmem:[%s349 + $0x2c] sm:$0xf]
        %v407 = vld [vmem:[%s349 + $0x30] sm:$0xf]
        %v408 = vld [vmem:[%s349 + $0x34] sm:$0xf]
        %v409 = vld [vmem:[%s349 + $0x38] sm:$0xf]
        %v410 = vld [vmem:[%s349 + $0x3c] sm:$0xf]
        %v411 = vld [vmem:[%s349 + $0x40] sm:$0xf]
        %v412 = vld [vmem:[%s349 + $0x44] sm:$0xf]
        %v413 = vld [vmem:[%s349 + $0x48] sm:$0xf]
        %v414 = vld [vmem:[%s349 + $0x4c] sm:$0xf]
        %v415 = vld [vmem:[%s349 + $0x50] sm:$0xf]
        %v416 = vld [vmem:[%s349 + $0x54] sm:$0xf]
        %v417 = vld [vmem:[%s349 + $0x58] sm:$0xf]
        %v418 = vld [vmem:[%s349 + $0x5c] sm:$0xf]
        %v419 = vld [vmem:[%s349 + $0x60] sm:$0xf]
        %v420 = vld [vmem:[%s349 + $0x64] sm:$0xf]
        %v421 = vld [vmem:[%s349 + $0x68] sm:$0xf]
        %v422 = vld [vmem:[%s349 + $0x6c] sm:$0xf]
        %v423 = vld [vmem:[%s349 + $0x70] sm:$0xf]
        %v424 = vld [vmem:[%s349 + $0x74] sm:$0xf]
        %v425 = vld [vmem:[%s349 + $0x78] sm:$0xf]
        %v426 = vld [vmem:[%s349 + $0x7c] sm:$0xf]
        %v427 = vunpack.c.l.bf16 %v395
        %v428 = vunpack.c.l.bf16 %v396
        %v429 = vunpack.c.l.bf16 %v397
        %v430 = vunpack.c.l.bf16 %v398
        %v431 = vunpack.c.l.bf16 %v399
        %v432 = vunpack.c.l.bf16 %v400
        %v433 = vunpack.c.l.bf16 %v401
        %v434 = vunpack.c.l.bf16 %v402
        %v435 = vunpack.c.l.bf16 %v403
        %v436 = vunpack.c.l.bf16 %v404
        %v437 = vunpack.c.l.bf16 %v405
        %v438 = vunpack.c.l.bf16 %v406
        %v439 = vunpack.c.l.bf16 %v407
        %v440 = vunpack.c.l.bf16 %v408
        %v441 = vunpack.c.l.bf16 %v409
        %v442 = vunpack.c.l.bf16 %v410
        %v443 = vunpack.c.l.bf16 %v411
        %v444 = vunpack.c.l.bf16 %v412
        %v445 = vunpack.c.l.bf16 %v413
        %v446 = vunpack.c.l.bf16 %v414
        %v447 = vunpack.c.l.bf16 %v415
        %v448 = vunpack.c.l.bf16 %v416
        %v449 = vunpack.c.l.bf16 %v417
        %v450 = vunpack.c.l.bf16 %v418
        %v451 = vunpack.c.l.bf16 %v419
        %v452 = vunpack.c.l.bf16 %v420
        %v453 = vunpack.c.l.bf16 %v421
        %v454 = vunpack.c.l.bf16 %v422
        %v455 = vunpack.c.l.bf16 %v423
        %v456 = vunpack.c.l.bf16 %v424
        %v457 = vunpack.c.l.bf16 %v425
        %v458 = vunpack.c.l.bf16 %v426
        %v461 = vunpack.c.l.s4 1983009808
        %v462 = vunpack.c.0.s8 %v461
        %v463 = vlaneseq
        %v464 = vshrl.u32 %v463, 7
        %v465 = vsub.s32 %v462, %v464
        %v466 = vrot.slane %v394, %v465
        %v467 = vcombine.high %v466, %v466
        %470 = vmatprep.subr.mxu0 0.0
        %471 = vmatpush1.msra.mxu0 %v427
        %472 = vmatprep.subr.mxu0 0.0
        %473 = vmatpush1.msra.mxu0 %v428
        %474 = vmatprep.subr.mxu0 0.0
        %475 = vmatpush1.msra.mxu0 %v429
        %476 = vmatprep.subr.mxu0 0.0
        %477 = vmatpush1.msra.mxu0 %v430
        %478 = vmatprep.subr.mxu0 0.0
        %479 = vmatpush1.msra.mxu0 %v431
        %480 = vmatprep.subr.mxu0 0.0
        %481 = vmatpush1.msra.mxu0 %v432
        %482 = vmatprep.subr.mxu0 0.0
        %483 = vmatpush1.msra.mxu0 %v433
        %484 = vmatprep.subr.mxu0 0.0
        %485 = vmatpush1.msra.mxu0 %v434
        %486 = vmatprep.subr.mxu0 0.0
        %487 = vmatpush1.msra.mxu0 %v435
        %488 = vmatprep.subr.mxu0 0.0
        %489 = vmatpush1.msra.mxu0 %v436
        %490 = vmatprep.subr.mxu0 0.0
        %491 = vmatpush1.msra.mxu0 %v437
        %492 = vmatprep.subr.mxu0 0.0
        %493 = vmatpush1.msra.mxu0 %v438
        %494 = vmatprep.subr.mxu0 0.0
        %495 = vmatpush1.msra.mxu0 %v439
        %496 = vmatprep.subr.mxu0 0.0
        %497 = vmatpush1.msra.mxu0 %v440
        %498 = vmatprep.subr.mxu0 0.0
        %499 = vmatpush1.msra.mxu0 %v441
        %500 = vmatprep.subr.mxu0 0.0
        %501 = vmatpush1.msra.mxu0 %v442
        %502 = vmatprep.subr.mxu0 0.0
        %503 = vmatpush1.msra.mxu0 %v443
        %504 = vmatprep.subr.mxu0 0.0
        %505 = vmatpush1.msra.mxu0 %v444
        %506 = vmatprep.subr.mxu0 0.0
        %507 = vmatpush1.msra.mxu0 %v445
        %508 = vmatprep.subr.mxu0 0.0
        %509 = vmatpush1.msra.mxu0 %v446
        %510 = vmatprep.subr.mxu0 0.0
        %511 = vmatpush1.msra.mxu0 %v447
        %512 = vmatprep.subr.mxu0 0.0
        %513 = vmatpush1.msra.mxu0 %v448
        %514 = vmatprep.subr.mxu0 0.0
        %515 = vmatpush1.msra.mxu0 %v449
        %516 = vmatprep.subr.mxu0 0.0
        %517 = vmatpush1.msra.mxu0 %v450
        %518 = vmatprep.subr.mxu0 0.0
        %519 = vmatpush1.msra.mxu0 %v451
        %520 = vmatprep.subr.mxu0 0.0
        %521 = vmatpush1.msra.mxu0 %v452
        %522 = vmatprep.subr.mxu0 0.0
        %523 = vmatpush1.msra.mxu0 %v453
        %524 = vmatprep.subr.mxu0 0.0
        %525 = vmatpush1.msra.mxu0 %v454
        %526 = vmatprep.subr.mxu0 0.0
        %527 = vmatpush1.msra.mxu0 %v455
        %528 = vmatprep.subr.mxu0 0.0
        %529 = vmatpush1.msra.mxu0 %v456
        %530 = vmatprep.subr.mxu0 0.0
        %531 = vmatpush1.msra.mxu0 %v457
        %532 = vmatprep.subr.mxu0 0.0
        %533 = vmatpush1.msra.mxu0 %v458
        %534 = vmatprep.mubr.f32.mxu0 %v467
        %535 = vmatmul.mubr.f32.gmra.mrb[0].mxu0 %v466
        %v536 = vpop.f32.mrb[0].mxu0
        %v537 = vadd.f32 0.0, %v536
        %v538 = vpop.f32.mrb[0].mxu0
        %539 = vdwg.mxu0
        %v540 = vadd.f32 %v393, %v537
        %541 = vst [vmem:[#allocation2] sm:$0x3] %v540
        // Predicated region
        $region78: #{lstmmodule_forward.3} parent=68 // pred_check
          %p542 = pneg %p388
        $region79: #{lstmmodule_forward.3} parent=68 // pred_check_branch
          %544 = sbr.rel (%p542) target = $region81
        $region80: #{lstmmodule_forward.3} parent=68 // pred_region
          %v545 = vld [vmem:[#allocation2] sm:$0x3]
          %v546 = vld [vmem:[%s387] sm:$0x1]
          %v548 = vlaneseq
          %v549 = vshrl.u32 %v548, 7
          %v550 = vsub.s32 0, %v549
          %v551 = vrot.slane %v546, %v550
          %v553 = vadd.f32 %v545, %v551
          %v554 = vmax.f32 %v553, 0.0
          %555 = vst [vmem:[%s377] sm:$0x3] %v554
        $region81: #{lstmmodule_forward.3} parent=68 // pred_fallthru
          _
        %s556 = sand.u32 %s117, 1
        %s557 = scalar_lea.sflag [#allocation5], %s556
        %s558 = sand.u32 %s117, 1
        %s559 = smul.addr %s558, 2
        %s560 = scalar_lea.vmem [#allocation4], %s559
        // Predicated region
        $region82: #{lstmmodule_forward.3} parent=68 // pred_check
          %p561 = pneg %p127
        $region83: #{lstmmodule_forward.3} parent=68 // pred_check_branch
          %563 = sbr.rel (%p561) target = $region85
        $region84: #{lstmmodule_forward.3} parent=68 // pred_region
          %s565 = ssub.s32 32, 32
          %566 = vsyncadd %s557, %s565
          %s567 = smul.addr %s21, 32
          %s568 = scalar_lea.hbm %s3, %s567
          %s570 = sshll.u32 %s560, 4
          %s571 = int_to_ptr.vmem [resolvable:$true] %s570
          %573 = dma.vmem_to_hbm [thread:$0]  %s571, 32, %s568, %s557
        $region85: #{lstmmodule_forward.3} parent=68 // pred_fallthru
          _
      $region69: #{lstmmodule_forward.3} parent=5 // pred_fallthru
        _
      %p574 = scmp.le.s32.totalorder 2, %s12
      // Predicated region
      $region86: #{lstmmodule_forward.3} parent=5 // pred_check
        %p575 = pneg %p574
      $region87: #{lstmmodule_forward.3} parent=5 // pred_check_branch
        %577 = sbr.rel (%p575) target = $region89
      $region88: #{lstmmodule_forward.3} parent=5 // pred_region
        %s578 = ssub.s32 %s12, 2
        // Predicated region
        $region90: #{lstmmodule_forward.3} parent=88 // pred_check
          %p579 = pneg %p133
        $region91: #{lstmmodule_forward.3} parent=88 // pred_check_branch
          %581 = sbr.rel (%p579) target = $region93
        $region92: #{lstmmodule_forward.3} parent=88 // pred_region
          %s582 = sand.u32 %s118, 1
          %s583 = scalar_lea.sflag [#allocation5], %s582
          %s584 = sand.u32 %s118, 1
          %s585 = smul.addr %s584, 2
          %s586 = scalar_lea.vmem [#allocation4], %s585
          %587 = dma.done %s583, 32
        $region93: #{lstmmodule_forward.3} parent=88 // pred_fallthru
          _
      $region89: #{lstmmodule_forward.3} parent=5 // pred_fallthru
        _
    $region6: #{lstmmodule_forward.3} parent=1 // loop_footer
      %s16 = sadd.s32 1, %s12
    $region7: #{lstmmodule_forward.3} parent=1 // loop_footer_branch
      %11 = sbr.rel target = $region3
    $region8: #{lstmmodule_forward.3} parent=1 // loop_exit
      _
    %588 = vsyncpa [#allocation5], 1
    %s589 = scalar_lea.sflag [#allocation5], 1
    %590 = vsyncpa %s589, 1

// kernel: lstmmodule_forward.2
$region0: #{lstmmodule_forward.2}
  #allocation0 [shape = 'u32[]', space=smem, size = 0x4, offset = 0x4, fixed_abs, tag = 'smem constant byte address 0x4 - core index']
  #allocation1 [shape = 'u32[144,128]{1,0:T(1,128)}', space=vmem, size = 0x12000, scoped, tag = 'internal scratch']
  #allocation2 [shape = 'f32[16,128]{1,0:T(8,128)}', space=vmem, size = 0x2000, scoped, tag = 'scratch operand']
  %s0 = inlined_call_operand.vmem [shape: f32[16,16], index: 0, kind: input, shape index: {}]
  %s1 = inlined_call_operand.vmem [shape: f32[16,128], index: 1, kind: input, shape index: {}]
  %s2 = inlined_call_operand.vmem [shape: f32[32,128], index: 2, kind: input, shape index: {}]
  %s3 = inlined_call_operand.vmem [shape: f32[1,128], index: 3, kind: input, shape index: {}]
  %s4 = inlined_call_operand.vmem [shape: f32[8,2,32], index: 4, kind: output, shape index: {}]
  %s5 = sld [smem:[#allocation0]]
  $region33: #{lstmmodule_forward.2} parent=0
    _
  %s7 = ssub.s32 1, %s5
  %s8 = scalar_select 0, %s7, %s5
  // Predicated region
  $region2: #{lstmmodule_forward.2} parent=0 // pred_check
    _
  $region3: #{lstmmodule_forward.2} parent=0 // pred_check_branch
    %10 = sbr.rel (0) target = $region5
  $region4: #{lstmmodule_forward.2} parent=0 // pred_region
    _
  $region5: #{lstmmodule_forward.2} parent=0 // pred_fallthru
    _
  // Predicated region
  $region6: #{lstmmodule_forward.2} parent=0 // pred_check
    _
  $region7: #{lstmmodule_forward.2} parent=0 // pred_check_branch
    %12 = sbr.rel (0) target = $region9
  $region8: #{lstmmodule_forward.2} parent=0 // pred_region
    _
  $region9: #{lstmmodule_forward.2} parent=0 // pred_fallthru
    _
  // Predicated region
  $region10: #{lstmmodule_forward.2} parent=0 // pred_check
    _
  $region11: #{lstmmodule_forward.2} parent=0 // pred_check_branch
    %14 = sbr.rel (0) target = $region13
  $region12: #{lstmmodule_forward.2} parent=0 // pred_region
    _
  $region13: #{lstmmodule_forward.2} parent=0 // pred_fallthru
    _
  // Predicated region
  $region14: #{lstmmodule_forward.2} parent=0 // pred_check
    _
  $region15: #{lstmmodule_forward.2} parent=0 // pred_check_branch
    %16 = sbr.rel (0) target = $region17
  $region16: #{lstmmodule_forward.2} parent=0 // pred_region
    _
  $region17: #{lstmmodule_forward.2} parent=0 // pred_fallthru
    _
  %v17 = vld [vmem:[%s0] sm:$0xff]
  %v18 = vld [vmem:[%s0 + $0x8] sm:$0xff]
  %v19 = vld [vmem:[%s1] sm:$0xff]
  %v20 = vld [vmem:[%s1 + $0x8] sm:$0xff]
  %v21 = vld [vmem:[%s3] sm:$0x1]
  %v23 = vlaneseq
  %v24 = vshrl.u32 %v23, 7
  %v25 = vsub.s32 0, %v24
  %v26 = vrot.slane %v21, %v25
  %vm28 = vcmask 130048
  %v30 = vsel %vm28, %v17, 0
  %v33 = vsel %vm28, %v18, 0
  %35 = vmatprep.subr.mxu0 0.0
  %36 = vmatpush1.msra.mxu0 %v19
  %37 = vmatprep.subr.mxu0 0.0
  %38 = vmatpush1.msra.mxu0 %v20
  %39 = vmatprep.subr.mxu0 0.0
  %40 = vmatpush1.msra.mxu0 0.0
  %41 = vmatprep.subr.mxu0 0.0
  %42 = vmatpush1.msra.mxu0 0.0
  %43 = vmatprep.subr.mxu0 0.0
  %44 = vmatpush1.msra.mxu0 0.0
  %45 = vmatprep.subr.mxu0 0.0
  %46 = vmatpush1.msra.mxu0 0.0
  %47 = vmatprep.subr.mxu0 0.0
  %48 = vmatpush1.msra.mxu0 0.0
  %49 = vmatprep.subr.mxu0 0.0
  %50 = vmatpush1.msra.mxu0 0.0
  %51 = vmatprep.subr.mxu0 0.0
  %52 = vmatpush1.msra.mxu0 0.0
  %53 = vmatprep.subr.mxu0 0.0
  %54 = vmatpush1.msra.mxu0 0.0
  %55 = vmatprep.subr.mxu0 0.0
  %56 = vmatpush1.msra.mxu0 0.0
  %57 = vmatprep.subr.mxu0 0.0
  %58 = vmatpush1.msra.mxu0 0.0
  %59 = vmatprep.subr.mxu0 0.0
  %60 = vmatpush1.msra.mxu0 0.0
  %61 = vmatprep.subr.mxu0 0.0
  %62 = vmatpush1.msra.mxu0 0.0
  %63 = vmatprep.subr.mxu0 0.0
  %64 = vmatpush1.msra.mxu0 0.0
  %65 = vmatprep.subr.mxu0 0.0
  %66 = vmatpush1.msra.mxu0 0.0
  %67 = vmatprep.subr.mxu0 0.0
  %68 = vmatpush1.msra.mxu0 0.0
  %69 = vmatprep.subr.mxu0 0.0
  %70 = vmatpush1.msra.mxu0 0.0
  %71 = vmatprep.subr.mxu0 0.0
  %72 = vmatpush1.msra.mxu0 0.0
  %73 = vmatprep.subr.mxu0 0.0
  %74 = vmatpush1.msra.mxu0 0.0
  %75 = vmatprep.subr.mxu0 0.0
  %76 = vmatpush1.msra.mxu0 0.0
  %77 = vmatprep.subr.mxu0 0.0
  %78 = vmatpush1.msra.mxu0 0.0
  %79 = vmatprep.subr.mxu0 0.0
  %80 = vmatpush1.msra.mxu0 0.0
  %81 = vmatprep.subr.mxu0 0.0
  %82 = vmatpush1.msra.mxu0 0.0
  %83 = vmatprep.subr.mxu0 0.0
  %84 = vmatpush1.msra.mxu0 0.0
  %85 = vmatprep.subr.mxu0 0.0
  %86 = vmatpush1.msra.mxu0 0.0
  %87 = vmatprep.subr.mxu0 0.0
  %88 = vmatpush1.msra.mxu0 0.0
  %89 = vmatprep.subr.mxu0 0.0
  %90 = vmatpush1.msra.mxu0 0.0
  %91 = vmatprep.subr.mxu0 0.0
  %92 = vmatpush1.msra.mxu0 0.0
  %93 = vmatprep.subr.mxu0 0.0
  %94 = vmatpush1.msra.mxu0 0.0
  %95 = vmatprep.subr.mxu0 0.0
  %96 = vmatpush1.msra.mxu0 0.0
  %97 = vmatprep.subr.mxu0 0.0
  %98 = vmatpush1.msra.mxu0 0.0
  %99 = vmatprep.mubr.f32.mxu0 0.0
  %100 = vmatmul.mubr.f32.gmra.mrb[0].mxu0 %v30
  %v101 = vpop.f32.mrb[0].mxu0
  %v102 = vadd.f32 %v26, %v101
  %v103 = vpop.f32.mrb[0].mxu0
  %104 = vmatprep.mubr.f32.mxu0 0.0
  %105 = vmatmul.mubr.f32.gmra.mrb[0].mxu0 %v33
  %v106 = vpop.f32.mrb[0].mxu0
  %v107 = vadd.f32 %v26, %v106
  %v108 = vpop.f32.mrb[0].mxu0
  %109 = vdwg.mxu0
  %110 = vst [vmem:[#allocation2] sm:$0xff] %v102
  %111 = vst [vmem:[#allocation2 + $0x8] sm:$0xff] %v107
  loop: start=0, step=1, limit=8
  $region18: #{lstmmodule_forward.2} parent=0 // loop_pre_header
    _
  $region19: #{lstmmodule_forward.2} parent=0 // loop_header
    %s113 = sphi 0, %s117
    %p114 = scmp.ge.s32.totalorder %s113, 8
    %v118 = vphi 0.0, %v227
    %v119 = vphi 0.0, %v221
  $region20: #{lstmmodule_forward.2} parent=0 // loop_header_branch
    %116 = sbr.rel (%p114) target = $region24
  $region21: #{lstmmodule_forward.2} parent=0 // loop_body
    %s120 = smul.u32 %s113, 2
    %s121 = scalar_lea.vmem [#allocation2], %s120
    %v122 = vld [vmem:[%s121] sm:$0x3]
    %v123 = vld [vmem:[%s2] sm:$0xff]
    %v124 = vld [vmem:[%s2 + $0x8] sm:$0xff]
    %v125 = vld [vmem:[%s2 + $0x10] sm:$0xff]
    %v126 = vld [vmem:[%s2 + $0x18] sm:$0xff]
    %128 = vrot.lane.b32.xlu0 %v118, 32
    %v129 = vpop.permute.xlu0 %128
    %vm130 = vcmask 261120
    %v131 = vsel %vm130, %v129, 0
    %133 = vmatprep.subr.mxu0 0.0
    %134 = vmatpush1.msra.mxu0 %v123
    %135 = vmatprep.subr.mxu0 0.0
    %136 = vmatpush1.msra.mxu0 %v124
    %137 = vmatprep.subr.mxu0 0.0
    %138 = vmatpush1.msra.mxu0 %v125
    %139 = vmatprep.subr.mxu0 0.0
    %140 = vmatpush1.msra.mxu0 %v126
    %141 = vmatprep.subr.mxu0 0.0
    %142 = vmatpush1.msra.mxu0 0.0
    %143 = vmatprep.subr.mxu0 0.0
    %144 = vmatpush1.msra.mxu0 0.0
    %145 = vmatprep.subr.mxu0 0.0
    %146 = vmatpush1.msra.mxu0 0.0
    %147 = vmatprep.subr.mxu0 0.0
    %148 = vmatpush1.msra.mxu0 0.0
    %149 = vmatprep.subr.mxu0 0.0
    %150 = vmatpush1.msra.mxu0 0.0
    %151 = vmatprep.subr.mxu0 0.0
    %152 = vmatpush1.msra.mxu0 0.0
    %153 = vmatprep.subr.mxu0 0.0
    %154 = vmatpush1.msra.mxu0 0.0
    %155 = vmatprep.subr.mxu0 0.0
    %156 = vmatpush1.msra.mxu0 0.0
    %157 = vmatprep.subr.mxu0 0.0
    %158 = vmatpush1.msra.mxu0 0.0
    %159 = vmatprep.subr.mxu0 0.0
    %160 = vmatpush1.msra.mxu0 0.0
    %161 = vmatprep.subr.mxu0 0.0
    %162 = vmatpush1.msra.mxu0 0.0
    %163 = vmatprep.subr.mxu0 0.0
    %164 = vmatpush1.msra.mxu0 0.0
    %165 = vmatprep.subr.mxu0 0.0
    %166 = vmatpush1.msra.mxu0 0.0
    %167 = vmatprep.subr.mxu0 0.0
    %168 = vmatpush1.msra.mxu0 0.0
    %169 = vmatprep.subr.mxu0 0.0
    %170 = vmatpush1.msra.mxu0 0.0
    %171 = vmatprep.subr.mxu0 0.0
    %172 = vmatpush1.msra.mxu0 0.0
    %173 = vmatprep.subr.mxu0 0.0
    %174 = vmatpush1.msra.mxu0 0.0
    %175 = vmatprep.subr.mxu0 0.0
    %176 = vmatpush1.msra.mxu0 0.0
    %177 = vmatprep.subr.mxu0 0.0
    %178 = vmatpush1.msra.mxu0 0.0
    %179 = vmatprep.subr.mxu0 0.0
    %180 = vmatpush1.msra.mxu0 0.0
    %181 = vmatprep.subr.mxu0 0.0
    %182 = vmatpush1.msra.mxu0 0.0
    %183 = vmatprep.subr.mxu0 0.0
    %184 = vmatpush1.msra.mxu0 0.0
    %185 = vmatprep.subr.mxu0 0.0
    %186 = vmatpush1.msra.mxu0 0.0
    %187 = vmatprep.subr.mxu0 0.0
    %188 = vmatpush1.msra.mxu0 0.0
    %189 = vmatprep.subr.mxu0 0.0
    %190 = vmatpush1.msra.mxu0 0.0
    %191 = vmatprep.subr.mxu0 0.0
    %192 = vmatpush1.msra.mxu0 0.0
    %193 = vmatprep.subr.mxu0 0.0
    %194 = vmatpush1.msra.mxu0 0.0
    %195 = vmatprep.subr.mxu0 0.0
    %196 = vmatpush1.msra.mxu0 0.0
    %197 = vmatprep.mubr.f32.mxu0 0.0
    %198 = vmatmul.mubr.f32.gmra.mrb[0].mxu0 %v131
    %v199 = vpop.f32.mrb[0].mxu0
    %v200 = vadd.f32 0.0, %v199
    %v201 = vpop.f32.mrb[0].mxu0
    %202 = vdwg.mxu0
    %v203 = vadd.f32 %v122, %v200
    %v204 = vxor.u32 %v203, 2147483648
    %v205 = vmul.f32 %v204, 1.442695
    %v206 = vpow.pop %v205
    %v207 = vadd.f32 %v206, 1.0
    %v208 = vrcp.pop %v207
    %v209 = vmul.f32 1.0, %v208
    %v210 = vtanh.pop %v203
    %v211 = vmul.f32 %v209, %v119
    %213 = vrot.lane.b32.xlu0 %v210, 64
    %v214 = vpop.permute.xlu0 %213
    %v216 = vmul.f32 %v209, %v214
    %218 = vrot.lane.b32.xlu0 %v216, 32
    %v219 = vpop.permute.xlu0 %218
    %v221 = vadd.f32 %v211, %v219
    %v222 = vtanh.pop %v221
    %224 = vrot.lane.b32.xlu0 %v222, 64
    %v225 = vpop.permute.xlu0 %224
    %v227 = vmul.f32 %v209, %v225
    %229 = vrot.lane.b32.xlu0 %v227, 32
    %v230 = vpop.permute.xlu0 %229
    %s232 = scalar_lea.vmem %s4, %s120
    %vm233 = vcmask 254976
    %234 = vst.msk [vmem:[%s232] sm:$0x3] %vm233, %v230
  $region22: #{lstmmodule_forward.2} parent=0 // loop_footer
    %s117 = sadd.s32 1, %s113
  $region23: #{lstmmodule_forward.2} parent=0 // loop_footer_branch
    %112 = sbr.rel target = $region19
  $region24: #{lstmmodule_forward.2} parent=0 // loop_exit
    _
  // Predicated region
  $region25: #{lstmmodule_forward.2} parent=0 // pred_check
    _
  $region26: #{lstmmodule_forward.2} parent=0 // pred_check_branch
    %236 = sbr.rel (0) target = $region28
  $region27: #{lstmmodule_forward.2} parent=0 // pred_region
    _
  $region28: #{lstmmodule_forward.2} parent=0 // pred_fallthru
    _
  // Predicated region
  $region29: #{lstmmodule_forward.2} parent=0 // pred_check
    _
  $region30: #{lstmmodule_forward.2} parent=0 // pred_check_branch
    %238 = sbr.rel (0) target = $region32
  $region31: #{lstmmodule_forward.2} parent=0 // pred_region
    _
  $region32: #{lstmmodule_forward.2} parent=0 // pred_fallthru
    _

</llo_original>
